<compile_context>
chip_gen: v5e
topology: v5e:2x2
jax: 0.10.0
libtpu: 0.0.40
codegen_flags: <defaults>
</compile_context>

<pallas_src>
import functools
import math

import jax
import jax.numpy as jnp
from jax import lax
from jax.experimental import pallas as pl
from jax.experimental.pallas import tpu as pltpu


def _attention_kernel(*refs, inv_scale, compute_dtype, probs_dtype, with_probs):
    (hq_ref, hfull_ref, mask_ref,
     wq_ref, bq_ref, wk_ref, bk_ref, wv_ref, bv_ref, wo_ref, bo_ref) = refs[:11]
    if with_probs:
        ctx_ref, probs_ref = refs[11:13]
        k_cache, v_cache, acc_ref = refs[13:16]
    else:
        ctx_ref = refs[11]
        probs_ref = None
        k_cache, v_cache, acc_ref = refs[12:15]

    qi = pl.program_id(1)
    hd = pl.program_id(2)

    # --- Fill the per-head K/V cache once per (batch, head), at q_tile == 0. ---
    @pl.when(qi == 0)
    def _fill_kv():
        h_full = hfull_ref[0]                                        # [S, H]
        k_h = jnp.dot(h_full, wk_ref[0],
                      preferred_element_type=jnp.float32) + bk_ref[0]
        v_h = jnp.dot(h_full, wv_ref[0],
                      preferred_element_type=jnp.float32) + bv_ref[0]
        k_cache[hd] = k_h.astype(compute_dtype)
        v_cache[hd] = v_h.astype(compute_dtype)

    # --- Query projection for this (q_tile, head); fold 1/sqrt(dh) into q. ---
    h_q = hq_ref[0]                                                  # [TQ, H]
    q_h = (jnp.dot(h_q, wq_ref[0], preferred_element_type=jnp.float32)
           + bq_ref[0]) * inv_scale
    q_h = q_h.astype(compute_dtype)                                  # [TQ, dh]

    k_h = k_cache[hd]                                                # [S, dh]
    v_h = v_cache[hd]                                                # [S, dh]

    # scores = q_h @ k_h.T without an explicit transpose: contract last dims.
    scores = lax.dot_general(q_h, k_h, (((1,), (1,)), ((), ())),
                             preferred_element_type=jnp.float32)      # [TQ, S]
    scores = scores + mask_ref[0]            # additive mask, broadcast on VPU

    # Softmax in f32 (max-subtracted), normalisation as reciprocal * multiply.
    m = jnp.max(scores, axis=-1, keepdims=True)
    e = jnp.exp(scores - m)
    denom = jnp.sum(e, axis=-1, keepdims=True)
    p = e * pl.reciprocal(denom, approx=False)    # approx=True for extra speed

    if probs_ref is not None:
        probs_ref[0, 0] = p.astype(probs_dtype)

    # Eval-mode dropout == identity; head_mask not supported (see TODO above).

    # Per-head contribution to the output projection, accumulated over heads:
    #   out = sum_h (p_h @ v_h) @ wo[h*dh:(h+1)*dh, :] + bo
    pv = jnp.dot(p.astype(compute_dtype), v_h,
                 preferred_element_type=jnp.float32)                 # [TQ, dh]
    contrib = jnp.dot(pv.astype(compute_dtype), wo_ref[0],
                      preferred_element_type=jnp.float32)            # [TQ, H]

    @pl.when(hd == 0)
    def _init_acc():
        acc_ref[...] = jnp.zeros_like(acc_ref)

    acc_ref[...] += contrib

    @pl.when(hd == pl.num_programs(2) - 1)
    def _finalize():
        ctx_ref[0] = (acc_ref[...] + bo_ref[0]).astype(ctx_ref.dtype)


def transformer_transducer_attention(hidden_states, params, attention_mask=None,
                                     *, num_heads,
                                     compute_dtype=jnp.bfloat16,
                                     probs_dtype=jnp.float32,
                                     return_probs=True,
                                     q_tile=None,
                                     is_decoder=False):
    B, S, H = hidden_states.shape
    assert H % num_heads == 0
    dh = H // num_heads
    inv_scale = 1.0 / math.sqrt(dh)

    # --- Query-tile size: multiple of 8 (sublane) dividing S, capped at 256. ---
    if q_tile is None:
        if S <= 256:
            q_tile = S
        else:
            q_tile = next((t for t in (256, 128, 64, 32, 16, 8) if S % t == 0), S)
    TQ = q_tile
    assert S % TQ == 0
    n_q = S // TQ

    # --- Mask: keep compact [B, 1-or-S, S]; broadcast happens in-kernel. ---
    if attention_mask is None:
        mask = jnp.zeros((B, 1, S), dtype=jnp.float32)
    else:
        m = attention_mask.astype(jnp.float32)
        if m.ndim == 2:                       # [B(or 1), S] key-padding style
            m = m[:, None, None, :]
        elif m.ndim == 3:                     # [B(or 1), Sq, S]
            m = m[:, None, :, :]
        assert m.ndim == 4
        assert m.shape[1] == 1, "per-head additive masks not supported"
        Sq = m.shape[2]
        assert Sq in (1, S)
        mask = jnp.broadcast_to(m, (B, 1, Sq, S)).reshape(B, Sq, S)
    Sq = mask.shape[1]
    if Sq == 1:
        mask_spec = pl.BlockSpec((1, 1, S), lambda b, qi, hd: (b, 0, 0))
    else:
        mask_spec = pl.BlockSpec((1, TQ, S), lambda b, qi, hd: (b, qi, 0))

    # --- Pack weights per head so BlockSpec (not in-kernel slicing) selects. ---
    cd = compute_dtype
    f32 = jnp.float32
    wq = params["wq"].reshape(H, num_heads, dh).transpose(1, 0, 2).astype(cd)
    wk = params["wk"].reshape(H, num_heads, dh).transpose(1, 0, 2).astype(cd)
    wv = params["wv"].reshape(H, num_heads, dh).transpose(1, 0, 2).astype(cd)
    wo = params["wo"].reshape(num_heads, dh, H).astype(cd)
    bq = params["bq"].reshape(num_heads, 1, dh).astype(f32)
    bk = params["bk"].reshape(num_heads, 1, dh).astype(f32)
    bv = params["bv"].reshape(num_heads, 1, dh).astype(f32)
    bo = params["bo"].reshape(1, H).astype(f32)
    h_cd = hidden_states.astype(cd)

    w_spec = pl.BlockSpec((1, H, dh), lambda b, qi, hd: (hd, 0, 0))
    b_spec = pl.BlockSpec((1, 1, dh), lambda b, qi, hd: (hd, 0, 0))
    wo_spec = pl.BlockSpec((1, dh, H), lambda b, qi, hd: (hd, 0, 0))
    bo_spec = pl.BlockSpec((1, H), lambda b, qi, hd: (0, 0))

    in_specs = [
        pl.BlockSpec((1, TQ, H), lambda b, qi, hd: (b, qi, 0)),   # q-tile hidden
        pl.BlockSpec((1, S, H), lambda b, qi, hd: (b, 0, 0)),     # full hidden (K/V)
        mask_spec,
        w_spec, b_spec,     # query
        w_spec, b_spec,     # key
        w_spec, b_spec,     # value
        wo_spec, bo_spec,   # out_proj
    ]

    out_dtype = hidden_states.dtype
    ctx_shape = jax.ShapeDtypeStruct((B, S, H), out_dtype)
    ctx_spec = pl.BlockSpec((1, TQ, H), lambda b, qi, hd: (b, qi, 0))
    if return_probs:
        out_shape = (ctx_shape,
                     jax.ShapeDtypeStruct((B, num_heads, S, S), probs_dtype))
        out_specs = (ctx_spec,
                     pl.BlockSpec((1, 1, TQ, S), lambda b, qi, hd: (b, hd, qi, 0)))
    else:
        out_shape = ctx_shape
        out_specs = ctx_spec

    scratch_shapes = [
        pltpu.VMEM((num_heads, S, dh), cd),     # K cache (per batch, all heads)
        pltpu.VMEM((num_heads, S, dh), cd),     # V cache
        pltpu.VMEM((TQ, H), jnp.float32),       # output-projection accumulator
    ]

    kernel = functools.partial(_attention_kernel, inv_scale=inv_scale,
                               compute_dtype=cd, probs_dtype=probs_dtype,
                               with_probs=return_probs)

    outs = pl.pallas_call(
        kernel,
        out_shape=out_shape,
        grid=(B, n_q, num_heads),
        in_specs=in_specs,
        out_specs=out_specs,
        scratch_shapes=scratch_shapes,
        compiler_params=pltpu.CompilerParams(
            # batch is megacore/2-TC parallel; q-tile and head axes are
            # sequential (K/V cache fill + output-projection accumulation).
            dimension_semantics=("parallel", "arbitrary", "arbitrary"),
            vmem_limit_bytes=48 * 1024 * 1024,
        ),
    )(h_cd, h_cd, mask, wq, bq, wk, bk, wv, bv, wo, bo)

    if return_probs:
        ctx, probs = outs
    else:
        ctx, probs = outs, None

    past_key_values = None  # is_decoder=False path in the reference module
    return ctx, probs, past_key_values


def _reference(hidden_states, params, attention_mask, num_heads):
    """Pure-JAX f32 reference mirroring the PyTorch forward (absolute pos-emb, eval)."""
    B, S, H = hidden_states.shape
    dh = H // num_heads
    scale = math.sqrt(dh)

    def proj(x, w, b):
        return x @ w + b

    q = proj(hidden_states, params["wq"], params["bq"]).reshape(B, S, num_heads, dh).transpose(0, 2, 1, 3)
    k = proj(hidden_states, params["wk"], params["bk"]).reshape(B, S, num_heads, dh).transpose(0, 2, 1, 3)
    v = proj(hidden_states, params["wv"], params["bv"]).reshape(B, S, num_heads, dh).transpose(0, 2, 1, 3)

    scores = jnp.einsum("bhqd,bhkd->bhqk", q, k) / scale
    if attention_mask is not None:
        scores = scores + attention_mask
    probs = jax.nn.softmax(scores, axis=-1)
    ctx = jnp.einsum("bhqk,bhkd->bhqd", probs, v)
    ctx = ctx.transpose(0, 2, 1, 3).reshape(B, S, H)
    ctx = ctx @ params["wo"] + params["bo"]
    return ctx, probs


if __name__ == "__main__":
    # Small config: batch=2, seq=8, hidden=32, heads=4 (head_size=8)
    B, S, H, NH = 2, 8, 32, 4

    key = jax.random.PRNGKey(0)
    keys = jax.random.split(key, 10)
    init = lambda k, shape, s=0.1: (s * jax.random.normal(k, shape)).astype(jnp.float32)

    params = {
        "wq": init(keys[0], (H, H)), "bq": init(keys[1], (H,)),
        "wk": init(keys[2], (H, H)), "bk": init(keys[3], (H,)),
        "wv": init(keys[4], (H, H)), "bv": init(keys[5], (H,)),
        "wo": init(keys[6], (H, H)), "bo": init(keys[7], (H,)),
    }

    hidden_states = jax.random.normal(keys[8], (B, S, H), dtype=jnp.float32)
    # Additive attention mask (0 = keep, large negative = masked), shape [B,1,1,S]
    mask_bits = jax.random.bernoulli(keys[9], 0.9, (B, 1, 1, S))
    attention_mask = jnp.where(mask_bits, 0.0, -1e9).astype(jnp.float32)

    ref_ctx, ref_probs = _reference(hidden_states, params, attention_mask, NH)

    # 1) f32 compute path: tight correctness check.
    ctx32, probs32, past_kv = transformer_transducer_attention(
        hidden_states, params, attention_mask, num_heads=NH,
        compute_dtype=jnp.float32)
    jax.block_until_ready((ctx32, probs32))
    assert jnp.allclose(ctx32, ref_ctx, atol=2e-4, rtol=2e-4), "f32 context mismatch"
    assert jnp.allclose(probs32, ref_probs, atol=1e-5, rtol=1e-4), "f32 probs mismatch"
    assert past_kv is None

    # 2) bf16 compute path (default, MXU-friendly on v6e/v7x): loose tolerance.
    ctx_bf, probs_bf, _ = transformer_transducer_attention(
        hidden_states, params, attention_mask, num_heads=NH,
        compute_dtype=jnp.bfloat16)
    jax.block_until_ready((ctx_bf, probs_bf))
    assert jnp.allclose(ctx_bf, ref_ctx, atol=5e-2, rtol=5e-2), "bf16 context mismatch"
    assert jnp.allclose(probs_bf, ref_probs, atol=2e-2, rtol=5e-2), "bf16 probs mismatch"

    # 3) probs-writeback elided (dominant HBM traffic removed).
    ctx_np, probs_np, _ = transformer_transducer_attention(
        hidden_states, params, attention_mask, num_heads=NH,
        compute_dtype=jnp.float32, return_probs=False)
    jax.block_until_ready(ctx_np)
    assert probs_np is None
    assert jnp.allclose(ctx_np, ref_ctx, atol=2e-4, rtol=2e-4), "no-probs context mismatch"

    print("KERNEL_OK")
</pallas_src>

<mosaic_0001>
module attributes {stable_mosaic.version = 11 : i64} {
  func.func @_attention_kernel(%arg0: i32, %arg1: i32, %arg2: i32, %arg3: memref<1x8x32xf32, #tpu.memory_space<vmem>>, %arg4: memref<1x8x32xf32, #tpu.memory_space<vmem>>, %arg5: memref<1x1x8xf32, #tpu.memory_space<vmem>>, %arg6: memref<1x32x8xf32, #tpu.memory_space<vmem>>, %arg7: memref<1x1x8xf32, #tpu.memory_space<vmem>>, %arg8: memref<1x32x8xf32, #tpu.memory_space<vmem>>, %arg9: memref<1x1x8xf32, #tpu.memory_space<vmem>>, %arg10: memref<1x32x8xf32, #tpu.memory_space<vmem>>, %arg11: memref<1x1x8xf32, #tpu.memory_space<vmem>>, %arg12: memref<1x8x32xf32, #tpu.memory_space<vmem>>, %arg13: memref<1x32xf32, #tpu.memory_space<vmem>>, %arg14: memref<1x8x32xf32, #tpu.memory_space<vmem>>, %arg15: memref<1x1x8x8xf32, #tpu.memory_space<vmem>>, %arg16: memref<4x8x8xf32, #tpu.memory_space<vmem>>, %arg17: memref<4x8x8xf32, #tpu.memory_space<vmem>>, %arg18: memref<8x32xf32, #tpu.memory_space<vmem>>) attributes {dimension_semantics = [#tpu.dimension_semantics<parallel>, #tpu.dimension_semantics<arbitrary>, #tpu.dimension_semantics<arbitrary>], iteration_bounds = array<i64: 2, 1, 4>, scalar_prefetch = 0 : i64, scratch_operands = 3 : i64, tpu.core_type = #tpu.core_type<tc>, window_params = [{transform_indices = @transform_0, window_bounds = array<i64: 1, 8, 32>}, {transform_indices = @transform_1, window_bounds = array<i64: 1, 8, 32>}, {transform_indices = @transform_2, window_bounds = array<i64: 1, 1, 8>}, {transform_indices = @transform_3, window_bounds = array<i64: 1, 32, 8>}, {transform_indices = @transform_4, window_bounds = array<i64: 1, 1, 8>}, {transform_indices = @transform_5, window_bounds = array<i64: 1, 32, 8>}, {transform_indices = @transform_6, window_bounds = array<i64: 1, 1, 8>}, {transform_indices = @transform_7, window_bounds = array<i64: 1, 32, 8>}, {transform_indices = @transform_8, window_bounds = array<i64: 1, 1, 8>}, {transform_indices = @transform_9, window_bounds = array<i64: 1, 8, 32>}, {pipeline_mode = #tpu.pipeline_mode<synchronous>, transform_indices = @transform_10, window_bounds = array<i64: 1, 32>}, {transform_indices = @transform_11, window_bounds = array<i64: 1, 8, 32>}, {transform_indices = @transform_12, window_bounds = array<i64: 1, 1, 8, 8>}]} {
    %c0_i32 = arith.constant 0 : i32
    %0 = arith.cmpi eq, %arg1, %c0_i32 : i32
    %1 = arith.extui %0 : i1 to i32
    %c0_i32_0 = arith.constant 0 : i32
    %2 = arith.cmpi ne, %1, %c0_i32_0 : i32
    scf.if %2 {
      %c0_36 = arith.constant 0 : index
      %c0_37 = arith.constant 0 : index
      %c0_38 = arith.constant 0 : index
      %51 = vector.load %arg4[%c0_36, %c0_37, %c0_38] : memref<1x8x32xf32, #tpu.memory_space<vmem>>, vector<1x8x32xf32>
      %52 = vector.shape_cast %51 : vector<1x8x32xf32> to vector<8x32xf32>
      %c0_39 = arith.constant 0 : index
      %c0_40 = arith.constant 0 : index
      %c0_41 = arith.constant 0 : index
      %53 = vector.load %arg8[%c0_39, %c0_40, %c0_41] : memref<1x32x8xf32, #tpu.memory_space<vmem>>, vector<1x32x8xf32>
      %54 = vector.shape_cast %53 : vector<1x32x8xf32> to vector<32x8xf32>
      %cst_42 = arith.constant dense<0.000000e+00> : vector<8x8xf32>
      %55 = tpu.matmul %52, %54, %cst_42 {dimension_numbers = #tpu.dot_dimension_numbers<[1], [0], [0], [1], [0, 0, 1, 1], [], []>} : vector<8x32xf32>, vector<32x8xf32>, vector<8x8xf32> -> vector<8x8xf32>
      %c0_43 = arith.constant 0 : index
      %c0_44 = arith.constant 0 : index
      %c0_45 = arith.constant 0 : index
      %56 = vector.load %arg9[%c0_43, %c0_44, %c0_45] : memref<1x1x8xf32, #tpu.memory_space<vmem>>, vector<1x1x8xf32>
      %57 = vector.shape_cast %56 : vector<1x1x8xf32> to vector<1x8xf32>
      %58 = vector.broadcast %57 : vector<1x8xf32> to vector<8x8xf32>
      %59 = arith.addf %55, %58 : vector<8x8xf32>
      %c0_46 = arith.constant 0 : index
      %c0_47 = arith.constant 0 : index
      %c0_48 = arith.constant 0 : index
      %60 = vector.load %arg10[%c0_46, %c0_47, %c0_48] : memref<1x32x8xf32, #tpu.memory_space<vmem>>, vector<1x32x8xf32>
      %61 = vector.shape_cast %60 : vector<1x32x8xf32> to vector<32x8xf32>
      %cst_49 = arith.constant dense<0.000000e+00> : vector<8x8xf32>
      %62 = tpu.matmul %52, %61, %cst_49 {dimension_numbers = #tpu.dot_dimension_numbers<[1], [0], [0], [1], [0, 0, 1, 1], [], []>} : vector<8x32xf32>, vector<32x8xf32>, vector<8x8xf32> -> vector<8x8xf32>
      %c0_50 = arith.constant 0 : index
      %c0_51 = arith.constant 0 : index
      %c0_52 = arith.constant 0 : index
      %63 = vector.load %arg11[%c0_50, %c0_51, %c0_52] : memref<1x1x8xf32, #tpu.memory_space<vmem>>, vector<1x1x8xf32>
      %64 = vector.shape_cast %63 : vector<1x1x8xf32> to vector<1x8xf32>
      %65 = vector.broadcast %64 : vector<1x8xf32> to vector<8x8xf32>
      %66 = arith.addf %62, %65 : vector<8x8xf32>
      %67 = arith.index_cast %arg2 : i32 to index
      %c0_53 = arith.constant 0 : index
      %c0_54 = arith.constant 0 : index
      %68 = vector.load %arg16[%67, %c0_53, %c0_54] : memref<4x8x8xf32, #tpu.memory_space<vmem>>, vector<1x8x8xf32>
      %69 = vector.shape_cast %68 : vector<1x8x8xf32> to vector<8x8xf32>
      %70 = vector.shape_cast %59 : vector<8x8xf32> to vector<1x8x8xf32>
      tpu.vector_store %arg16[%67, %c0_53, %c0_54], %70 {strides = array<i32>} : memref<4x8x8xf32, #tpu.memory_space<vmem>>, vector<1x8x8xf32>,
      %71 = arith.index_cast %arg2 : i32 to index
      %c0_55 = arith.constant 0 : index
      %c0_56 = arith.constant 0 : index
      %72 = vector.load %arg17[%71, %c0_55, %c0_56] : memref<4x8x8xf32, #tpu.memory_space<vmem>>, vector<1x8x8xf32>
      %73 = vector.shape_cast %72 : vector<1x8x8xf32> to vector<8x8xf32>
      %74 = vector.shape_cast %66 : vector<8x8xf32> to vector<1x8x8xf32>
      tpu.vector_store %arg17[%71, %c0_55, %c0_56], %74 {strides = array<i32>} : memref<4x8x8xf32, #tpu.memory_space<vmem>>, vector<1x8x8xf32>,
    } else {
    }
    %c0 = arith.constant 0 : index
    %c0_1 = arith.constant 0 : index
    %c0_2 = arith.constant 0 : index
    %3 = vector.load %arg3[%c0, %c0_1, %c0_2] : memref<1x8x32xf32, #tpu.memory_space<vmem>>, vector<1x8x32xf32>
    %4 = vector.shape_cast %3 : vector<1x8x32xf32> to vector<8x32xf32>
    %c0_3 = arith.constant 0 : index
    %c0_4 = arith.constant 0 : index
    %c0_5 = arith.constant 0 : index
    %5 = vector.load %arg6[%c0_3, %c0_4, %c0_5] : memref<1x32x8xf32, #tpu.memory_space<vmem>>, vector<1x32x8xf32>
    %6 = vector.shape_cast %5 : vector<1x32x8xf32> to vector<32x8xf32>
    %cst = arith.constant dense<0.000000e+00> : vector<8x8xf32>
    %7 = tpu.matmul %4, %6, %cst {dimension_numbers = #tpu.dot_dimension_numbers<[1], [0], [0], [1], [0, 0, 1, 1], [], []>} : vector<8x32xf32>, vector<32x8xf32>, vector<8x8xf32> -> vector<8x8xf32>
    %c0_6 = arith.constant 0 : index
    %c0_7 = arith.constant 0 : index
    %c0_8 = arith.constant 0 : index
    %8 = vector.load %arg7[%c0_6, %c0_7, %c0_8] : memref<1x1x8xf32, #tpu.memory_space<vmem>>, vector<1x1x8xf32>
    %9 = vector.shape_cast %8 : vector<1x1x8xf32> to vector<1x8xf32>
    %10 = vector.broadcast %9 : vector<1x8xf32> to vector<8x8xf32>
    %11 = arith.addf %7, %10 : vector<8x8xf32>
    %cst_9 = arith.constant 0.353553385 : f32
    %12 = vector.broadcast %cst_9 : f32 to vector<8x8xf32>
    %13 = arith.mulf %11, %12 : vector<8x8xf32>
    %14 = arith.index_cast %arg2 : i32 to index
    %c0_10 = arith.constant 0 : index
    %c0_11 = arith.constant 0 : index
    %15 = vector.load %arg16[%14, %c0_10, %c0_11] : memref<4x8x8xf32, #tpu.memory_space<vmem>>, vector<1x8x8xf32>
    %16 = vector.shape_cast %15 : vector<1x8x8xf32> to vector<8x8xf32>
    %17 = arith.index_cast %arg2 : i32 to index
    %c0_12 = arith.constant 0 : index
    %c0_13 = arith.constant 0 : index
    %18 = vector.load %arg17[%17, %c0_12, %c0_13] : memref<4x8x8xf32, #tpu.memory_space<vmem>>, vector<1x8x8xf32>
    %19 = vector.shape_cast %18 : vector<1x8x8xf32> to vector<8x8xf32>
    %cst_14 = arith.constant dense<0.000000e+00> : vector<8x8xf32>
    %20 = tpu.matmul %13, %16, %cst_14 {dimension_numbers = #tpu.dot_dimension_numbers<[1], [1], [0], [0], [0, 0, 1, 0], [], []>} : vector<8x8xf32>, vector<8x8xf32>, vector<8x8xf32> -> vector<8x8xf32>
    %c0_15 = arith.constant 0 : index
    %c0_16 = arith.constant 0 : index
    %c0_17 = arith.constant 0 : index
    %21 = vector.load %arg5[%c0_15, %c0_16, %c0_17] : memref<1x1x8xf32, #tpu.memory_space<vmem>>, vector<1x1x8xf32>
    %22 = vector.shape_cast %21 : vector<1x1x8xf32> to vector<1x8xf32>
    %23 = vector.broadcast %22 : vector<1x8xf32> to vector<8x8xf32>
    %24 = arith.addf %20, %23 : vector<8x8xf32>
    %cst_18 = arith.constant dense<0xFF800000> : vector<8xf32>
    %25 = vector.multi_reduction <maximumf>, %24, %cst_18 [1] : vector<8x8xf32> to vector<8xf32>
    %26 = vector.shape_cast %25 : vector<8xf32> to vector<8x1xf32>
    %27 = vector.broadcast %26 : vector<8x1xf32> to vector<8x8xf32>
    %28 = arith.subf %24, %27 : vector<8x8xf32>
    %29 = math.exp %28 : vector<8x8xf32>
    %cst_19 = arith.constant dense<0.000000e+00> : vector<8xf32>
    %30 = vector.multi_reduction <add>, %29, %cst_19 [1] : vector<8x8xf32> to vector<8xf32>
    %31 = vector.shape_cast %30 : vector<8xf32> to vector<8x1xf32>
    %32 = tpu.reciprocal %31 : vector<8x1xf32> -> vector<8x1xf32>
    %33 = vector.broadcast %32 : vector<8x1xf32> to vector<8x8xf32>
    %34 = arith.mulf %29, %33 : vector<8x8xf32>
    %c0_20 = arith.constant 0 : index
    %c0_21 = arith.constant 0 : index
    %c0_22 = arith.constant 0 : index
    %c0_23 = arith.constant 0 : index
    %35 = vector.load %arg15[%c0_20, %c0_21, %c0_22, %c0_23] : memref<1x1x8x8xf32, #tpu.memory_space<vmem>>, vector<1x1x8x8xf32>
    %36 = vector.shape_cast %35 : vector<1x1x8x8xf32> to vector<8x8xf32>
    %37 = vector.shape_cast %34 : vector<8x8xf32> to vector<1x1x8x8xf32>
    tpu.vector_store %arg15[%c0_20, %c0_21, %c0_22, %c0_23], %37 {strides = array<i32>} : memref<1x1x8x8xf32, #tpu.memory_space<vmem>>, vector<1x1x8x8xf32>,
    %cst_24 = arith.constant dense<0.000000e+00> : vector<8x8xf32>
    %38 = tpu.matmul %34, %19, %cst_24 {dimension_numbers = #tpu.dot_dimension_numbers<[1], [0], [0], [1], [0, 0, 1, 1], [], []>} : vector<8x8xf32>, vector<8x8xf32>, vector<8x8xf32> -> vector<8x8xf32>
    %c0_25 = arith.constant 0 : index
    %c0_26 = arith.constant 0 : index
    %c0_27 = arith.constant 0 : index
    %39 = vector.load %arg12[%c0_25, %c0_26, %c0_27] : memref<1x8x32xf32, #tpu.memory_space<vmem>>, vector<1x8x32xf32>
    %40 = vector.shape_cast %39 : vector<1x8x32xf32> to vector<8x32xf32>
    %cst_28 = arith.constant dense<0.000000e+00> : vector<8x32xf32>
    %41 = tpu.matmul %38, %40, %cst_28 {dimension_numbers = #tpu.dot_dimension_numbers<[1], [0], [0], [1], [0, 0, 1, 1], [], []>} : vector<8x8xf32>, vector<8x32xf32>, vector<8x32xf32> -> vector<8x32xf32>
    %c0_i32_29 = arith.constant 0 : i32
    %42 = arith.cmpi eq, %arg2, %c0_i32_29 : i32
    %43 = arith.extui %42 : i1 to i32
    %c0_i32_30 = arith.constant 0 : i32
    %44 = arith.cmpi ne, %43, %c0_i32_30 : i32
    scf.if %44 {
      %cst_36 = arith.constant 0.000000e+00 : f32
      %51 = vector.broadcast %cst_36 : f32 to vector<8x32xf32>
      %c0_37 = arith.constant 0 : index
      %c0_38 = arith.constant 0 : index
      %52 = vector.load %arg18[%c0_37, %c0_38] : memref<8x32xf32, #tpu.memory_space<vmem>>, vector<8x32xf32>
      tpu.vector_store %arg18[%c0_37, %c0_38], %51 {strides = array<i32>} : memref<8x32xf32, #tpu.memory_space<vmem>>, vector<8x32xf32>,
    } else {
    }
    %c0_31 = arith.constant 0 : index
    %c0_32 = arith.constant 0 : index
    %45 = vector.load %arg18[%c0_31, %c0_32] : memref<8x32xf32, #tpu.memory_space<vmem>>, vector<8x32xf32>
    %46 = arith.addf %45, %41 : vector<8x32xf32>
    %c0_33 = arith.constant 0 : index
    %c0_34 = arith.constant 0 : index
    %47 = vector.load %arg18[%c0_33, %c0_34] : memref<8x32xf32, #tpu.memory_space<vmem>>, vector<8x32xf32>
    tpu.vector_store %arg18[%c0_33, %c0_34], %46 {strides = array<i32>} : memref<8x32xf32, #tpu.memory_space<vmem>>, vector<8x32xf32>,
    %c3_i32 = arith.constant 3 : i32
    %48 = arith.cmpi eq, %arg2, %c3_i32 : i32
    %49 = arith.extui %48 : i1 to i32
    %c0_i32_35 = arith.constant 0 : i32
    %50 = arith.cmpi ne, %49, %c0_i32_35 : i32
    scf.if %50 {
      %c0_36 = arith.constant 0 : index
      %c0_37 = arith.constant 0 : index
      %51 = vector.load %arg18[%c0_36, %c0_37] : memref<8x32xf32, #tpu.memory_space<vmem>>, vector<8x32xf32>
      %c0_38 = arith.constant 0 : index
      %c0_39 = arith.constant 0 : index
      %52 = vector.load %arg13[%c0_38, %c0_39] : memref<1x32xf32, #tpu.memory_space<vmem>>, vector<1x32xf32>
      %53 = vector.shape_cast %52 : vector<1x32xf32> to vector<32xf32>
      %54 = vector.shape_cast %53 : vector<32xf32> to vector<1x32xf32>
      %55 = vector.broadcast %54 : vector<1x32xf32> to vector<8x32xf32>
      %56 = arith.addf %51, %55 : vector<8x32xf32>
      %c0_40 = arith.constant 0 : index
      %c0_41 = arith.constant 0 : index
      %c0_42 = arith.constant 0 : index
      %57 = vector.load %arg14[%c0_40, %c0_41, %c0_42] : memref<1x8x32xf32, #tpu.memory_space<vmem>>, vector<1x8x32xf32>
      %58 = vector.shape_cast %57 : vector<1x8x32xf32> to vector<8x32xf32>
      %59 = vector.shape_cast %56 : vector<8x32xf32> to vector<1x8x32xf32>
      tpu.vector_store %arg14[%c0_40, %c0_41, %c0_42], %59 {strides = array<i32>} : memref<1x8x32xf32, #tpu.memory_space<vmem>>, vector<1x8x32xf32>,
    } else {
    }
    return
  }
  func.func @transform_0(%arg0: i32, %arg1: i32, %arg2: i32) -> (i32, i32, i32) {
    %c0_i32 = arith.constant 0 : i32
    %c0_i32_0 = arith.constant 0 : i32
    return %arg0, %arg1, %c0_i32 : i32, i32, i32
  }
  func.func @transform_1(%arg0: i32, %arg1: i32, %arg2: i32) -> (i32, i32, i32) {
    %c0_i32 = arith.constant 0 : i32
    %c0_i32_0 = arith.constant 0 : i32
    %c0_i32_1 = arith.constant 0 : i32
    return %arg0, %c0_i32, %c0_i32_0 : i32, i32, i32
  }
  func.func @transform_2(%arg0: i32, %arg1: i32, %arg2: i32) -> (i32, i32, i32) {
    %c0_i32 = arith.constant 0 : i32
    %c0_i32_0 = arith.constant 0 : i32
    %c0_i32_1 = arith.constant 0 : i32
    return %arg0, %c0_i32, %c0_i32_0 : i32, i32, i32
  }
  func.func @transform_3(%arg0: i32, %arg1: i32, %arg2: i32) -> (i32, i32, i32) {
    %c0_i32 = arith.constant 0 : i32
    %c0_i32_0 = arith.constant 0 : i32
    %c0_i32_1 = arith.constant 0 : i32
    return %arg2, %c0_i32, %c0_i32_0 : i32, i32, i32
  }
  func.func @transform_4(%arg0: i32, %arg1: i32, %arg2: i32) -> (i32, i32, i32) {
    %c0_i32 = arith.constant 0 : i32
    %c0_i32_0 = arith.constant 0 : i32
    %c0_i32_1 = arith.constant 0 : i32
    return %arg2, %c0_i32, %c0_i32_0 : i32, i32, i32
  }
  func.func @transform_5(%arg0: i32, %arg1: i32, %arg2: i32) -> (i32, i32, i32) {
    %c0_i32 = arith.constant 0 : i32
    %c0_i32_0 = arith.constant 0 : i32
    %c0_i32_1 = arith.constant 0 : i32
    return %arg2, %c0_i32, %c0_i32_0 : i32, i32, i32
  }
  func.func @transform_6(%arg0: i32, %arg1: i32, %arg2: i32) -> (i32, i32, i32) {
    %c0_i32 = arith.constant 0 : i32
    %c0_i32_0 = arith.constant 0 : i32
    %c0_i32_1 = arith.constant 0 : i32
    return %arg2, %c0_i32, %c0_i32_0 : i32, i32, i32
  }
  func.func @transform_7(%arg0: i32, %arg1: i32, %arg2: i32) -> (i32, i32, i32) {
    %c0_i32 = arith.constant 0 : i32
    %c0_i32_0 = arith.constant 0 : i32
    %c0_i32_1 = arith.constant 0 : i32
    return %arg2, %c0_i32, %c0_i32_0 : i32, i32, i32
  }
  func.func @transform_8(%arg0: i32, %arg1: i32, %arg2: i32) -> (i32, i32, i32) {
    %c0_i32 = arith.constant 0 : i32
    %c0_i32_0 = arith.constant 0 : i32
    %c0_i32_1 = arith.constant 0 : i32
    return %arg2, %c0_i32, %c0_i32_0 : i32, i32, i32
  }
  func.func @transform_9(%arg0: i32, %arg1: i32, %arg2: i32) -> (i32, i32, i32) {
    %c0_i32 = arith.constant 0 : i32
    %c0_i32_0 = arith.constant 0 : i32
    %c0_i32_1 = arith.constant 0 : i32
    return %arg2, %c0_i32, %c0_i32_0 : i32, i32, i32
  }
  func.func @transform_10(%arg0: i32, %arg1: i32, %arg2: i32) -> (i32, i32) {
    %c0_i32 = arith.constant 0 : i32
    %c0_i32_0 = arith.constant 0 : i32
    %c0_i32_1 = arith.constant 0 : i32
    return %c0_i32, %c0_i32_0 : i32, i32
  }
  func.func @transform_11(%arg0: i32, %arg1: i32, %arg2: i32) -> (i32, i32, i32) {
    %c0_i32 = arith.constant 0 : i32
    %c0_i32_0 = arith.constant 0 : i32
    return %arg0, %arg1, %c0_i32 : i32, i32, i32
  }
  func.func @transform_12(%arg0: i32, %arg1: i32, %arg2: i32) -> (i32, i32, i32, i32) {
    %c0_i32 = arith.constant 0 : i32
    %c0_i32_0 = arith.constant 0 : i32
    return %arg0, %arg2, %arg1, %c0_i32 : i32, i32, i32, i32
  }
}

</mosaic_0001>

<llo_original>
// kernel: tpu_custom_call.1
$region0: #{tpu_custom_call.1}
  #allocation0 [shape = 'u32[]', space=smem, size = 0x4, offset = 0x4, fixed_abs, tag = 'smem constant byte address 0x4 - core index']
  #allocation1 [shape = 'u32[72,128]{1,0:T(1,128)}', space=vmem, size = 0x9000, scoped, tag = 'internal scratch']
  #allocation2 [shape = 'f32[4,8,8]{2,1,0:T(8,128)}', space=vmem, size = 0x4000, scoped, tag = 'scratch operand']
  #allocation3 [shape = 'f32[4,8,8]{2,1,0:T(8,128)}', space=vmem, size = 0x4000, scoped, tag = 'scratch operand']
  #allocation4 [shape = 'f32[8,32]{1,0:T(8,128)}', space=vmem, size = 0x1000, scoped, tag = 'scratch operand']
  %s0 = inlined_call_operand.vmem [shape: f32[2,8,32], index: 0, kind: input, shape index: {}]
  %s1 = inlined_call_operand.vmem [shape: f32[2,8,32], index: 1, kind: input, shape index: {}]
  %s2 = inlined_call_operand.vmem [shape: f32[2,1,8], index: 2, kind: input, shape index: {}]
  %s3 = inlined_call_operand.vmem [shape: f32[4,32,8], index: 3, kind: input, shape index: {}]
  %s4 = inlined_call_operand.vmem [shape: f32[4,1,8], index: 4, kind: input, shape index: {}]
  %s5 = inlined_call_operand.vmem [shape: f32[4,32,8], index: 5, kind: input, shape index: {}]
  %s6 = inlined_call_operand.vmem [shape: f32[4,1,8], index: 6, kind: input, shape index: {}]
  %s7 = inlined_call_operand.vmem [shape: f32[4,32,8], index: 7, kind: input, shape index: {}]
  %s8 = inlined_call_operand.vmem [shape: f32[4,1,8], index: 8, kind: input, shape index: {}]
  %s9 = inlined_call_operand.vmem [shape: f32[4,8,32], index: 9, kind: input, shape index: {}]
  %s10 = inlined_call_operand.vmem [shape: f32[1,32], index: 10, kind: input, shape index: {}]
  %s11 = inlined_call_operand.hbm [shape: f32[2,8,32], index: 11, kind: output, shape index: {0}]
  %s12 = inlined_call_operand.hbm [shape: f32[2,4,8,8], index: 12, kind: output, shape index: {1}]
  %13 = xla_tuple %s11, %s12
  %s14 = sld [smem:[#allocation0]]
  $region97: #{tpu_custom_call.1} parent=0
    _
  %s16 = ssub.s32 1, %s14
  %s17 = scalar_select 0, %s16, %s14
  $region1: #{tpu_custom_call.1} parent=0
    #allocation5 [shape = 'u8[8192]{0}', space=vmem, size = 0x2000, scoped, tag = 'output window, operand 0']
    #allocation6 [shape = 's32[2]{0}', space=sflag, size = 0x8, scoped, tag = 'scoped memory for tpu_custom_call.1']
    #allocation7 [shape = 'u8[8192]{0}', space=vmem, size = 0x2000, scoped, tag = 'output window, operand 1']
    #allocation8 [shape = 's32[2]{0}', space=sflag, size = 0x8, scoped, tag = 'scoped memory for tpu_custom_call.1']
    %18 = vsyncpa [#allocation6], 0
    %s19 = scalar_lea.sflag [#allocation6], 1
    %20 = vsyncpa %s19, 0
    %21 = vsyncpa [#allocation8], 0
    %s22 = scalar_lea.sflag [#allocation8], 1
    %23 = vsyncpa %s22, 0
    loop: start=0, step=1, limit=10
    $region2: #{tpu_custom_call.1} parent=1 // loop_pre_header
      _
    $region3: #{tpu_custom_call.1} parent=1 // loop_header
      %s25 = sphi 0, %s29
      %p26 = scmp.ge.s32.totalorder %s25, 10
      %s32 = sphi 0, %s51
      %s33 = sphi 0, %s47
      %s34 = sphi 0, %s43
      %s35 = sphi 0, %s32
      %s36 = sphi 0, %s33
      %s37 = sphi 0, %s34
      %s38 = sphi 0, %s35
      %s39 = sphi 0, %s36
      %s40 = sphi 0, %s37
      %s56 = sphi 0, %s58
      %s59 = sphi 0, %s56
      %s60 = sphi 0, %s59
      %s76 = sphi 0, %s60
      %s82 = sphi 0, %s84
      %s85 = sphi 0, %s82
      %s86 = sphi 0, %s85
      %s102 = sphi 0, %s86
      %s108 = sphi 0, %s110
      %s111 = sphi 0, %s108
      %s112 = sphi 0, %s111
      %s128 = sphi 0, %s112
      %s134 = sphi 0, %s136
      %s137 = sphi 0, %s134
      %s138 = sphi 0, %s137
      %s154 = sphi 0, %s138
      %s160 = sphi 0, %s162
      %s163 = sphi 0, %s160
      %s164 = sphi 0, %s163
      %s180 = sphi 0, %s164
      %s186 = sphi 0, %s188
      %s189 = sphi 0, %s186
      %s190 = sphi 0, %s189
      %s206 = sphi 0, %s190
      %s212 = sphi 0, %s214
      %s215 = sphi 0, %s212
      %s216 = sphi 0, %s215
      %s232 = sphi 0, %s216
      %s238 = sphi 0, %s240
      %s241 = sphi 0, %s238
      %s242 = sphi 0, %s241
      %s258 = sphi 0, %s242
      %s264 = sphi 0, %s266
      %s267 = sphi 0, %s264
      %s268 = sphi 0, %s267
      %s284 = sphi 0, %s268
      %s290 = sphi 0, %s292
      %s293 = sphi 0, %s290
      %s294 = sphi 0, %s293
      %s310 = sphi 0, %s294
      %s314 = sphi 0, %s314
      %s316 = sphi 0, %s314
      %s317 = sphi 0, %s316
      %s331 = sphi 0, %s317
      %s339 = sphi 0, %s341
      %s342 = sphi 0, %s339
      %s343 = sphi 0, %s342
      %s359 = sphi 0, %s343
      %s369 = sphi 0, %s371
      %s372 = sphi 0, %s369
      %s373 = sphi 0, %s372
      %s389 = sphi 0, %s373
    $region4: #{tpu_custom_call.1} parent=1 // loop_header_branch
      %28 = sbr.rel (%p26) target = $region8
    $region5: #{tpu_custom_call.1} parent=1 // loop_body
      %s30 = ssub.s32 %s25, 1
      %s31 = ssub.s32 %s25, 2
      %s41 = sadd.s32 1, %s34
      %p42 = scmp.ge.s32.totalorder %s41, 4
      %s43 = scalar_select %p42, 0, %s41
      %s44 = sadd.s32 1, %s33
      %s45 = scalar_select %p42, %s44, %s33
      %p46 = scmp.ge.s32.totalorder %s45, 1
      %s47 = scalar_select %p46, 0, %s45
      %s48 = sadd.s32 1, %s32
      %s49 = scalar_select %p46, %s48, %s32
      %p50 = scmp.ge.s32.totalorder %s49, 2
      %s51 = scalar_select %p50, 0, %s49
      %s52 = ssub.s32 %s32, %s51
      %s53 = ssub.s32 %s33, %s47
      %s54 = sor.u32 %s52, %s53
      %p55 = scmp.eq.s32.totalorder %s54, 0
      %s57 = sadd.s32 %s56, 1
      %s58 = scalar_select %p55, %s56, %s57
      %p61 = pneg %p55
      %p62 = scmp.eq.s32.totalorder %s25, 7
      %p63 = por %p61, %p62
      %p64 = scmp.ne.s32.totalorder %s56, %s59
      %p65 = scmp.eq.s32.totalorder %s25, 0
      %p66 = por %p64, %p65
      %p67 = scmp.ne.s32.totalorder %s56, %s59
      %p68 = scmp.eq.s32.totalorder %s30, 7
      %p69 = por %p67, %p68
      %p70 = scmp.ne.s32.totalorder %s59, %s60
      %p71 = scmp.eq.s32.totalorder %s30, 0
      %p72 = por %p70, %p71
      %p73 = scmp.ne.s32.totalorder %s59, %s60
      %p74 = scmp.eq.s32.totalorder %s31, 7
      %p75 = por %p73, %p74
      %p77 = scmp.ne.s32.totalorder %s60, %s76
      %p78 = scmp.eq.s32.totalorder %s31, 0
      %p79 = por %p77, %p78
      %s80 = ssub.s32 %s32, %s51
      %p81 = scmp.eq.s32.totalorder %s80, 0
      %s83 = sadd.s32 %s82, 1
      %s84 = scalar_select %p81, %s82, %s83
      %p87 = pneg %p81
      %p88 = scmp.eq.s32.totalorder %s25, 7
      %p89 = por %p87, %p88
      %p90 = scmp.ne.s32.totalorder %s82, %s85
      %p91 = scmp.eq.s32.totalorder %s25, 0
      %p92 = por %p90, %p91
      %p93 = scmp.ne.s32.totalorder %s82, %s85
      %p94 = scmp.eq.s32.totalorder %s30, 7
      %p95 = por %p93, %p94
      %p96 = scmp.ne.s32.totalorder %s85, %s86
      %p97 = scmp.eq.s32.totalorder %s30, 0
      %p98 = por %p96, %p97
      %p99 = scmp.ne.s32.totalorder %s85, %s86
      %p100 = scmp.eq.s32.totalorder %s31, 7
      %p101 = por %p99, %p100
      %p103 = scmp.ne.s32.totalorder %s86, %s102
      %p104 = scmp.eq.s32.totalorder %s31, 0
      %p105 = por %p103, %p104
      %s106 = ssub.s32 %s32, %s51
      %p107 = scmp.eq.s32.totalorder %s106, 0
      %s109 = sadd.s32 %s108, 1
      %s110 = scalar_select %p107, %s108, %s109
      %p113 = pneg %p107
      %p114 = scmp.eq.s32.totalorder %s25, 7
      %p115 = por %p113, %p114
      %p116 = scmp.ne.s32.totalorder %s108, %s111
      %p117 = scmp.eq.s32.totalorder %s25, 0
      %p118 = por %p116, %p117
      %p119 = scmp.ne.s32.totalorder %s108, %s111
      %p120 = scmp.eq.s32.totalorder %s30, 7
      %p121 = por %p119, %p120
      %p122 = scmp.ne.s32.totalorder %s111, %s112
      %p123 = scmp.eq.s32.totalorder %s30, 0
      %p124 = por %p122, %p123
      %p125 = scmp.ne.s32.totalorder %s111, %s112
      %p126 = scmp.eq.s32.totalorder %s31, 7
      %p127 = por %p125, %p126
      %p129 = scmp.ne.s32.totalorder %s112, %s128
      %p130 = scmp.eq.s32.totalorder %s31, 0
      %p131 = por %p129, %p130
      %s132 = ssub.s32 %s34, %s43
      %p133 = scmp.eq.s32.totalorder %s132, 0
      %s135 = sadd.s32 %s134, 1
      %s136 = scalar_select %p133, %s134, %s135
      %p139 = pneg %p133
      %p140 = scmp.eq.s32.totalorder %s25, 7
      %p141 = por %p139, %p140
      %p142 = scmp.ne.s32.totalorder %s134, %s137
      %p143 = scmp.eq.s32.totalorder %s25, 0
      %p144 = por %p142, %p143
      %p145 = scmp.ne.s32.totalorder %s134, %s137
      %p146 = scmp.eq.s32.totalorder %s30, 7
      %p147 = por %p145, %p146
      %p148 = scmp.ne.s32.totalorder %s137, %s138
      %p149 = scmp.eq.s32.totalorder %s30, 0
      %p150 = por %p148, %p149
      %p151 = scmp.ne.s32.totalorder %s137, %s138
      %p152 = scmp.eq.s32.totalorder %s31, 7
      %p153 = por %p151, %p152
      %p155 = scmp.ne.s32.totalorder %s138, %s154
      %p156 = scmp.eq.s32.totalorder %s31, 0
      %p157 = por %p155, %p156
      %s158 = ssub.s32 %s34, %s43
      %p159 = scmp.eq.s32.totalorder %s158, 0
      %s161 = sadd.s32 %s160, 1
      %s162 = scalar_select %p159, %s160, %s161
      %p165 = pneg %p159
      %p166 = scmp.eq.s32.totalorder %s25, 7
      %p167 = por %p165, %p166
      %p168 = scmp.ne.s32.totalorder %s160, %s163
      %p169 = scmp.eq.s32.totalorder %s25, 0
      %p170 = por %p168, %p169
      %p171 = scmp.ne.s32.totalorder %s160, %s163
      %p172 = scmp.eq.s32.totalorder %s30, 7
      %p173 = por %p171, %p172
      %p174 = scmp.ne.s32.totalorder %s163, %s164
      %p175 = scmp.eq.s32.totalorder %s30, 0
      %p176 = por %p174, %p175
      %p177 = scmp.ne.s32.totalorder %s163, %s164
      %p178 = scmp.eq.s32.totalorder %s31, 7
      %p179 = por %p177, %p178
      %p181 = scmp.ne.s32.totalorder %s164, %s180
      %p182 = scmp.eq.s32.totalorder %s31, 0
      %p183 = por %p181, %p182
      %s184 = ssub.s32 %s34, %s43
      %p185 = scmp.eq.s32.totalorder %s184, 0
      %s187 = sadd.s32 %s186, 1
      %s188 = scalar_select %p185, %s186, %s187
      %p191 = pneg %p185
      %p192 = scmp.eq.s32.totalorder %s25, 7
      %p193 = por %p191, %p192
      %p194 = scmp.ne.s32.totalorder %s186, %s189
      %p195 = scmp.eq.s32.totalorder %s25, 0
      %p196 = por %p194, %p195
      %p197 = scmp.ne.s32.totalorder %s186, %s189
      %p198 = scmp.eq.s32.totalorder %s30, 7
      %p199 = por %p197, %p198
      %p200 = scmp.ne.s32.totalorder %s189, %s190
      %p201 = scmp.eq.s32.totalorder %s30, 0
      %p202 = por %p200, %p201
      %p203 = scmp.ne.s32.totalorder %s189, %s190
      %p204 = scmp.eq.s32.totalorder %s31, 7
      %p205 = por %p203, %p204
      %p207 = scmp.ne.s32.totalorder %s190, %s206
      %p208 = scmp.eq.s32.totalorder %s31, 0
      %p209 = por %p207, %p208
      %s210 = ssub.s32 %s34, %s43
      %p211 = scmp.eq.s32.totalorder %s210, 0
      %s213 = sadd.s32 %s212, 1
      %s214 = scalar_select %p211, %s212, %s213
      %p217 = pneg %p211
      %p218 = scmp.eq.s32.totalorder %s25, 7
      %p219 = por %p217, %p218
      %p220 = scmp.ne.s32.totalorder %s212, %s215
      %p221 = scmp.eq.s32.totalorder %s25, 0
      %p222 = por %p220, %p221
      %p223 = scmp.ne.s32.totalorder %s212, %s215
      %p224 = scmp.eq.s32.totalorder %s30, 7
      %p225 = por %p223, %p224
      %p226 = scmp.ne.s32.totalorder %s215, %s216
      %p227 = scmp.eq.s32.totalorder %s30, 0
      %p228 = por %p226, %p227
      %p229 = scmp.ne.s32.totalorder %s215, %s216
      %p230 = scmp.eq.s32.totalorder %s31, 7
      %p231 = por %p229, %p230
      %p233 = scmp.ne.s32.totalorder %s216, %s232
      %p234 = scmp.eq.s32.totalorder %s31, 0
      %p235 = por %p233, %p234
      %s236 = ssub.s32 %s34, %s43
      %p237 = scmp.eq.s32.totalorder %s236, 0
      %s239 = sadd.s32 %s238, 1
      %s240 = scalar_select %p237, %s238, %s239
      %p243 = pneg %p237
      %p244 = scmp.eq.s32.totalorder %s25, 7
      %p245 = por %p243, %p244
      %p246 = scmp.ne.s32.totalorder %s238, %s241
      %p247 = scmp.eq.s32.totalorder %s25, 0
      %p248 = por %p246, %p247
      %p249 = scmp.ne.s32.totalorder %s238, %s241
      %p250 = scmp.eq.s32.totalorder %s30, 7
      %p251 = por %p249, %p250
      %p252 = scmp.ne.s32.totalorder %s241, %s242
      %p253 = scmp.eq.s32.totalorder %s30, 0
      %p254 = por %p252, %p253
      %p255 = scmp.ne.s32.totalorder %s241, %s242
      %p256 = scmp.eq.s32.totalorder %s31, 7
      %p257 = por %p255, %p256
      %p259 = scmp.ne.s32.totalorder %s242, %s258
      %p260 = scmp.eq.s32.totalorder %s31, 0
      %p261 = por %p259, %p260
      %s262 = ssub.s32 %s34, %s43
      %p263 = scmp.eq.s32.totalorder %s262, 0
      %s265 = sadd.s32 %s264, 1
      %s266 = scalar_select %p263, %s264, %s265
      %p269 = pneg %p263
      %p270 = scmp.eq.s32.totalorder %s25, 7
      %p271 = por %p269, %p270
      %p272 = scmp.ne.s32.totalorder %s264, %s267
      %p273 = scmp.eq.s32.totalorder %s25, 0
      %p274 = por %p272, %p273
      %p275 = scmp.ne.s32.totalorder %s264, %s267
      %p276 = scmp.eq.s32.totalorder %s30, 7
      %p277 = por %p275, %p276
      %p278 = scmp.ne.s32.totalorder %s267, %s268
      %p279 = scmp.eq.s32.totalorder %s30, 0
      %p280 = por %p278, %p279
      %p281 = scmp.ne.s32.totalorder %s267, %s268
      %p282 = scmp.eq.s32.totalorder %s31, 7
      %p283 = por %p281, %p282
      %p285 = scmp.ne.s32.totalorder %s268, %s284
      %p286 = scmp.eq.s32.totalorder %s31, 0
      %p287 = por %p285, %p286
      %s288 = ssub.s32 %s34, %s43
      %p289 = scmp.eq.s32.totalorder %s288, 0
      %s291 = sadd.s32 %s290, 1
      %s292 = scalar_select %p289, %s290, %s291
      %p295 = pneg %p289
      %p296 = scmp.eq.s32.totalorder %s25, 7
      %p297 = por %p295, %p296
      %p298 = scmp.ne.s32.totalorder %s290, %s293
      %p299 = scmp.eq.s32.totalorder %s25, 0
      %p300 = por %p298, %p299
      %p301 = scmp.ne.s32.totalorder %s290, %s293
      %p302 = scmp.eq.s32.totalorder %s30, 7
      %p303 = por %p301, %p302
      %p304 = scmp.ne.s32.totalorder %s293, %s294
      %p305 = scmp.eq.s32.totalorder %s30, 0
      %p306 = por %p304, %p305
      %p307 = scmp.ne.s32.totalorder %s293, %s294
      %p308 = scmp.eq.s32.totalorder %s31, 7
      %p309 = por %p307, %p308
      %p311 = scmp.ne.s32.totalorder %s294, %s310
      %p312 = scmp.eq.s32.totalorder %s31, 0
      %p313 = por %p311, %p312
      %s315 = sadd.s32 %s314, 1
      %p318 = scmp.eq.s32.totalorder %s25, 7
      %p319 = scmp.ne.s32.totalorder %s314, %s316
      %p320 = scmp.eq.s32.totalorder %s25, 0
      %p321 = por %p319, %p320
      %p322 = scmp.ne.s32.totalorder %s314, %s316
      %p323 = scmp.eq.s32.totalorder %s30, 7
      %p324 = por %p322, %p323
      %p325 = scmp.ne.s32.totalorder %s316, %s317
      %p326 = scmp.eq.s32.totalorder %s30, 0
      %p327 = por %p325, %p326
      %p328 = scmp.ne.s32.totalorder %s316, %s317
      %p329 = scmp.eq.s32.totalorder %s31, 7
      %p330 = por %p328, %p329
      %p332 = scmp.ne.s32.totalorder %s317, %s331
      %p333 = scmp.eq.s32.totalorder %s31, 0
      %p334 = por %p332, %p333
      %s335 = ssub.s32 %s32, %s51
      %s336 = ssub.s32 %s33, %s47
      %s337 = sor.u32 %s335, %s336
      %p338 = scmp.eq.s32.totalorder %s337, 0
      %s340 = sadd.s32 %s339, 1
      %s341 = scalar_select %p338, %s339, %s340
      %p344 = pneg %p338
      %p345 = scmp.eq.s32.totalorder %s25, 7
      %p346 = por %p344, %p345
      %p347 = scmp.ne.s32.totalorder %s339, %s342
      %p348 = scmp.eq.s32.totalorder %s25, 0
      %p349 = por %p347, %p348
      %p350 = scmp.ne.s32.totalorder %s339, %s342
      %p351 = scmp.eq.s32.totalorder %s30, 7
      %p352 = por %p350, %p351
      %p353 = scmp.ne.s32.totalorder %s342, %s343
      %p354 = scmp.eq.s32.totalorder %s30, 0
      %p355 = por %p353, %p354
      %p356 = scmp.ne.s32.totalorder %s342, %s343
      %p357 = scmp.eq.s32.totalorder %s31, 7
      %p358 = por %p356, %p357
      %p360 = scmp.ne.s32.totalorder %s343, %s359
      %p361 = scmp.eq.s32.totalorder %s31, 0
      %p362 = por %p360, %p361
      %s363 = ssub.s32 %s32, %s51
      %s364 = ssub.s32 %s34, %s43
      %s365 = sor.u32 %s363, %s364
      %s366 = ssub.s32 %s33, %s47
      %s367 = sor.u32 %s365, %s366
      %p368 = scmp.eq.s32.totalorder %s367, 0
      %s370 = sadd.s32 %s369, 1
      %s371 = scalar_select %p368, %s369, %s370
      %p374 = pneg %p368
      %p375 = scmp.eq.s32.totalorder %s25, 7
      %p376 = por %p374, %p375
      %p377 = scmp.ne.s32.totalorder %s369, %s372
      %p378 = scmp.eq.s32.totalorder %s25, 0
      %p379 = por %p377, %p378
      %p380 = scmp.ne.s32.totalorder %s369, %s372
      %p381 = scmp.eq.s32.totalorder %s30, 7
      %p382 = por %p380, %p381
      %p383 = scmp.ne.s32.totalorder %s372, %s373
      %p384 = scmp.eq.s32.totalorder %s30, 0
      %p385 = por %p383, %p384
      %p386 = scmp.ne.s32.totalorder %s372, %s373
      %p387 = scmp.eq.s32.totalorder %s31, 7
      %p388 = por %p386, %p387
      %p390 = scmp.ne.s32.totalorder %s373, %s389
      %p391 = scmp.eq.s32.totalorder %s31, 0
      %p392 = por %p390, %p391
      %p393 = scmp.le.s32.totalorder 1, %s25
      %p394 = scmp.lt.s32.totalorder %s25, 9
      %p395 = pnand %p393, %p394
      %p396 = pneg %p395
      // Predicated region
      $region9: #{tpu_custom_call.1} parent=5 // pred_check
        _
      $region10: #{tpu_custom_call.1} parent=5 // pred_check_branch
        %398 = sbr.rel (%p395) target = $region12
      $region11: #{tpu_custom_call.1} parent=5 // pred_region
        %s399 = ssub.s32 %s25, 1
        // Predicated region
        $region13: #{tpu_custom_call.1} parent=11 // pred_check
          %p400 = pneg %p327
        $region14: #{tpu_custom_call.1} parent=11 // pred_check_branch
          %402 = sbr.rel (%p400) target = $region16
        $region15: #{tpu_custom_call.1} parent=11 // pred_region
          _
        $region16: #{tpu_custom_call.1} parent=11 // pred_fallthru
          _
      $region12: #{tpu_custom_call.1} parent=5 // pred_fallthru
        _
      %p403 = scmp.lt.s32.totalorder %s25, 8
      // Predicated region
      $region17: #{tpu_custom_call.1} parent=5 // pred_check
        %p404 = pneg %p403
      $region18: #{tpu_custom_call.1} parent=5 // pred_check_branch
        %406 = sbr.rel (%p404) target = $region20
      $region19: #{tpu_custom_call.1} parent=5 // pred_region
        // Predicated region
        $region21: #{tpu_custom_call.1} parent=19 // pred_check
          %p407 = pneg %p66
        $region22: #{tpu_custom_call.1} parent=19 // pred_check_branch
          %409 = sbr.rel (%p407) target = $region24
        $region23: #{tpu_custom_call.1} parent=19 // pred_region
          %p410 = scmp.lt.s32.totalorder %s32, 1
          %s411 = scalar_select %p410, %s32, 1
          %p412 = scmp.lt.s32.totalorder %s33, 0
          %s413 = scalar_select %p412, %s33, 0
          %s414 = sadd.s32 %s413, %s411
          %s415 = smul.addr %s414, 8
          %s416 = scalar_lea.vmem %s0, %s415
        $region24: #{tpu_custom_call.1} parent=19 // pred_fallthru
          _
        // Predicated region
        $region25: #{tpu_custom_call.1} parent=19 // pred_check
          %p417 = pneg %p92
        $region26: #{tpu_custom_call.1} parent=19 // pred_check_branch
          %419 = sbr.rel (%p417) target = $region28
        $region27: #{tpu_custom_call.1} parent=19 // pred_region
          %p420 = scmp.lt.s32.totalorder %s32, 1
          %s421 = scalar_select %p420, %s32, 1
          %s422 = smul.addr %s421, 8
          %s423 = scalar_lea.vmem %s1, %s422
        $region28: #{tpu_custom_call.1} parent=19 // pred_fallthru
          _
        // Predicated region
        $region29: #{tpu_custom_call.1} parent=19 // pred_check
          %p424 = pneg %p118
        $region30: #{tpu_custom_call.1} parent=19 // pred_check_branch
          %426 = sbr.rel (%p424) target = $region32
        $region31: #{tpu_custom_call.1} parent=19 // pred_region
          %p427 = scmp.lt.s32.totalorder %s32, 1
          %s428 = scalar_select %p427, %s32, 1
          %s429 = scalar_lea.vmem %s2, %s428
        $region32: #{tpu_custom_call.1} parent=19 // pred_fallthru
          _
        // Predicated region
        $region33: #{tpu_custom_call.1} parent=19 // pred_check
          %p430 = pneg %p144
        $region34: #{tpu_custom_call.1} parent=19 // pred_check_branch
          %432 = sbr.rel (%p430) target = $region36
        $region35: #{tpu_custom_call.1} parent=19 // pred_region
          %p433 = scmp.lt.s32.totalorder %s34, 3
          %s434 = scalar_select %p433, %s34, 3
          %s435 = smul.addr %s434, 4
          %s436 = smul.addr %s435, 8
          %s437 = scalar_lea.vmem %s3, %s436
        $region36: #{tpu_custom_call.1} parent=19 // pred_fallthru
          _
        // Predicated region
        $region37: #{tpu_custom_call.1} parent=19 // pred_check
          %p438 = pneg %p170
        $region38: #{tpu_custom_call.1} parent=19 // pred_check_branch
          %440 = sbr.rel (%p438) target = $region40
        $region39: #{tpu_custom_call.1} parent=19 // pred_region
          %p441 = scmp.lt.s32.totalorder %s34, 3
          %s442 = scalar_select %p441, %s34, 3
          %s443 = scalar_lea.vmem %s4, %s442
        $region40: #{tpu_custom_call.1} parent=19 // pred_fallthru
          _
        // Predicated region
        $region41: #{tpu_custom_call.1} parent=19 // pred_check
          %p444 = pneg %p196
        $region42: #{tpu_custom_call.1} parent=19 // pred_check_branch
          %446 = sbr.rel (%p444) target = $region44
        $region43: #{tpu_custom_call.1} parent=19 // pred_region
          %p447 = scmp.lt.s32.totalorder %s34, 3
          %s448 = scalar_select %p447, %s34, 3
          %s449 = smul.addr %s448, 4
          %s450 = smul.addr %s449, 8
          %s451 = scalar_lea.vmem %s5, %s450
        $region44: #{tpu_custom_call.1} parent=19 // pred_fallthru
          _
        // Predicated region
        $region45: #{tpu_custom_call.1} parent=19 // pred_check
          %p452 = pneg %p222
        $region46: #{tpu_custom_call.1} parent=19 // pred_check_branch
          %454 = sbr.rel (%p452) target = $region48
        $region47: #{tpu_custom_call.1} parent=19 // pred_region
          %p455 = scmp.lt.s32.totalorder %s34, 3
          %s456 = scalar_select %p455, %s34, 3
          %s457 = scalar_lea.vmem %s6, %s456
        $region48: #{tpu_custom_call.1} parent=19 // pred_fallthru
          _
        // Predicated region
        $region49: #{tpu_custom_call.1} parent=19 // pred_check
          %p458 = pneg %p248
        $region50: #{tpu_custom_call.1} parent=19 // pred_check_branch
          %460 = sbr.rel (%p458) target = $region52
        $region51: #{tpu_custom_call.1} parent=19 // pred_region
          %p461 = scmp.lt.s32.totalorder %s34, 3
          %s462 = scalar_select %p461, %s34, 3
          %s463 = smul.addr %s462, 4
          %s464 = smul.addr %s463, 8
          %s465 = scalar_lea.vmem %s7, %s464
        $region52: #{tpu_custom_call.1} parent=19 // pred_fallthru
          _
        // Predicated region
        $region53: #{tpu_custom_call.1} parent=19 // pred_check
          %p466 = pneg %p274
        $region54: #{tpu_custom_call.1} parent=19 // pred_check_branch
          %468 = sbr.rel (%p466) target = $region56
        $region55: #{tpu_custom_call.1} parent=19 // pred_region
          %p469 = scmp.lt.s32.totalorder %s34, 3
          %s470 = scalar_select %p469, %s34, 3
          %s471 = scalar_lea.vmem %s8, %s470
        $region56: #{tpu_custom_call.1} parent=19 // pred_fallthru
          _
        // Predicated region
        $region57: #{tpu_custom_call.1} parent=19 // pred_check
          %p472 = pneg %p300
        $region58: #{tpu_custom_call.1} parent=19 // pred_check_branch
          %474 = sbr.rel (%p472) target = $region60
        $region59: #{tpu_custom_call.1} parent=19 // pred_region
          %p475 = scmp.lt.s32.totalorder %s34, 3
          %s476 = scalar_select %p475, %s34, 3
          %s477 = smul.addr %s476, 8
          %s478 = scalar_lea.vmem %s9, %s477
        $region60: #{tpu_custom_call.1} parent=19 // pred_fallthru
          _
      $region20: #{tpu_custom_call.1} parent=5 // pred_fallthru
        _
      %p479 = scmp.le.s32.totalorder 1, %s25
      %p480 = scmp.lt.s32.totalorder %s25, 9
      %p481 = pnand %p479, %p480
      %p482 = pneg %p481
      // Predicated region
      $region61: #{tpu_custom_call.1} parent=5 // pred_check
        _
      $region62: #{tpu_custom_call.1} parent=5 // pred_check_branch
        %484 = sbr.rel (%p481) target = $region64
      $region63: #{tpu_custom_call.1} parent=5 // pred_region
        %s485 = ssub.s32 %s25, 1
        %p486 = scmp.lt.s32.totalorder %s35, 1
        %s487 = scalar_select %p486, %s35, 1
        %p488 = scmp.lt.s32.totalorder %s36, 0
        %s489 = scalar_select %p488, %s36, 0
        %s490 = sadd.s32 %s489, %s487
        %s491 = smul.addr %s490, 8
        %s492 = scalar_lea.vmem %s0, %s491
        %p493 = pneg %p72
        %p494 = pneg %p69
        %p495 = scmp.lt.s32.totalorder %s35, 1
        %s496 = scalar_select %p495, %s35, 1
        %s497 = smul.addr %s496, 8
        %s498 = scalar_lea.vmem %s1, %s497
        %p499 = pneg %p98
        %p500 = pneg %p95
        %p501 = scmp.lt.s32.totalorder %s35, 1
        %s502 = scalar_select %p501, %s35, 1
        %s503 = scalar_lea.vmem %s2, %s502
        %p504 = pneg %p124
        %p505 = pneg %p121
        %p506 = scmp.lt.s32.totalorder %s37, 3
        %s507 = scalar_select %p506, %s37, 3
        %s508 = smul.addr %s507, 4
        %s509 = smul.addr %s508, 8
        %s510 = scalar_lea.vmem %s3, %s509
        %p511 = pneg %p150
        %p512 = pneg %p147
        %p513 = scmp.lt.s32.totalorder %s37, 3
        %s514 = scalar_select %p513, %s37, 3
        %s515 = scalar_lea.vmem %s4, %s514
        %p516 = pneg %p176
        %p517 = pneg %p173
        %p518 = scmp.lt.s32.totalorder %s37, 3
        %s519 = scalar_select %p518, %s37, 3
        %s520 = smul.addr %s519, 4
        %s521 = smul.addr %s520, 8
        %s522 = scalar_lea.vmem %s5, %s521
        %p523 = pneg %p202
        %p524 = pneg %p199
        %p525 = scmp.lt.s32.totalorder %s37, 3
        %s526 = scalar_select %p525, %s37, 3
        %s527 = scalar_lea.vmem %s6, %s526
        %p528 = pneg %p228
        %p529 = pneg %p225
        %p530 = scmp.lt.s32.totalorder %s37, 3
        %s531 = scalar_select %p530, %s37, 3
        %s532 = smul.addr %s531, 4
        %s533 = smul.addr %s532, 8
        %s534 = scalar_lea.vmem %s7, %s533
        %p535 = pneg %p254
        %p536 = pneg %p251
        %p537 = scmp.lt.s32.totalorder %s37, 3
        %s538 = scalar_select %p537, %s37, 3
        %s539 = scalar_lea.vmem %s8, %s538
        %p540 = pneg %p280
        %p541 = pneg %p277
        %p542 = scmp.lt.s32.totalorder %s37, 3
        %s543 = scalar_select %p542, %s37, 3
        %s544 = smul.addr %s543, 8
        %s545 = scalar_lea.vmem %s9, %s544
        %p546 = pneg %p306
        %p547 = pneg %p303
        %p548 = pneg %p327
        %p549 = pneg %p324
        %p550 = pneg %p355
        %p551 = pneg %p352
        %s552 = sand.u32 %s342, 1
        %s553 = scalar_lea.sflag [#allocation6], %s552
        %s554 = sand.u32 %s342, 1
        %s555 = smul.addr %s554, 8
        %s556 = scalar_lea.vmem [#allocation5], %s555
        %p557 = pneg %p385
        %p558 = pneg %p382
        %s559 = sand.u32 %s372, 1
        %s560 = scalar_lea.sflag [#allocation8], %s559
        %s561 = sand.u32 %s372, 1
        %s562 = smul.addr %s561, 8
        %s563 = scalar_lea.vmem [#allocation7], %s562
        %p564 = scmp.lt.s32.totalorder %s35, 1
        %s565 = scalar_select %p564, %s35, 1
        %p566 = scmp.lt.s32.totalorder %s36, 0
        %s567 = scalar_select %p566, %s36, 0
        %s568 = sadd.s32 %s567, %s565
        %s569 = smul.addr %s568, 8
        %s570 = scalar_lea.vmem %s0, %s569
        %p571 = scmp.lt.s32.totalorder %s35, 1
        %s572 = scalar_select %p571, %s35, 1
        %s573 = smul.addr %s572, 8
        %s574 = scalar_lea.vmem %s1, %s573
        %p575 = scmp.lt.s32.totalorder %s35, 1
        %s576 = scalar_select %p575, %s35, 1
        %s577 = scalar_lea.vmem %s2, %s576
        %p578 = scmp.lt.s32.totalorder %s37, 3
        %s579 = scalar_select %p578, %s37, 3
        %s580 = smul.addr %s579, 4
        %s581 = smul.addr %s580, 8
        %s582 = scalar_lea.vmem %s3, %s581
        %p583 = scmp.lt.s32.totalorder %s37, 3
        %s584 = scalar_select %p583, %s37, 3
        %s585 = scalar_lea.vmem %s4, %s584
        %p586 = scmp.lt.s32.totalorder %s37, 3
        %s587 = scalar_select %p586, %s37, 3
        %s588 = smul.addr %s587, 4
        %s589 = smul.addr %s588, 8
        %s590 = scalar_lea.vmem %s5, %s589
        %p591 = scmp.lt.s32.totalorder %s37, 3
        %s592 = scalar_select %p591, %s37, 3
        %s593 = scalar_lea.vmem %s6, %s592
        %p594 = scmp.lt.s32.totalorder %s37, 3
        %s595 = scalar_select %p594, %s37, 3
        %s596 = smul.addr %s595, 4
        %s597 = smul.addr %s596, 8
        %s598 = scalar_lea.vmem %s7, %s597
        %p599 = scmp.lt.s32.totalorder %s37, 3
        %s600 = scalar_select %p599, %s37, 3
        %s601 = scalar_lea.vmem %s8, %s600
        %p602 = scmp.lt.s32.totalorder %s37, 3
        %s603 = scalar_select %p602, %s37, 3
        %s604 = smul.addr %s603, 8
        %s605 = scalar_lea.vmem %s9, %s604
        %p606 = scmp.eq.s32.totalorder %s36, 0
        // Predicated region
        $region65: #{tpu_custom_call.1} parent=63 // pred_check
          %p607 = pneg %p606
        $region66: #{tpu_custom_call.1} parent=63 // pred_check_branch
          %609 = sbr.rel (%p607) target = $region68
        $region67: #{tpu_custom_call.1} parent=63 // pred_region
          %v610 = vld [vmem:[%s574] sm:$0xff]
          %v611 = vld [vmem:[%s590] sm:$0xff]
          %v612 = vld [vmem:[%s590 + $0x8] sm:$0xff]
          %v613 = vld [vmem:[%s590 + $0x10] sm:$0xff]
          %v614 = vld [vmem:[%s590 + $0x18] sm:$0xff]
          %v615 = vld [vmem:[%s593] sm:$0x1]
          %v617 = vperm.slane %v615, 0
          %vm619 = vcmask 261120
          %v621 = vsel %vm619, %v610, 0
          %623 = vmatpush.msra.mxu0 0.0
          %624 = vmatpush.msra.mxu0 0.0
          %625 = vmatpush.msra.mxu0 0.0
          %626 = vmatpush.msra.mxu0 0.0
          %627 = vmatpush.msra.mxu0 0.0
          %628 = vmatpush.msra.mxu0 0.0
          %629 = vmatpush.msra.mxu0 0.0
          %630 = vmatpush.msra.mxu0 0.0
          %631 = vmatpush.msra.mxu0 0.0
          %632 = vmatpush.msra.mxu0 0.0
          %633 = vmatpush.msra.mxu0 0.0
          %634 = vmatpush.msra.mxu0 0.0
          %635 = vmatpush.msra.mxu0 %v614
          %636 = vmatpush.msra.mxu0 %v613
          %637 = vmatpush.msra.mxu0 %v612
          %638 = vmatpush.msra.mxu0 %v611
          %639 = vmatmul.f32.gmra.mxu0 %v621
          %v640 = vpop.f32.mrf.mxu0
          %v641 = vadd.f32 %v617, %v640
          %642 = vdwg.mxu0
          %v643 = vld [vmem:[%s598] sm:$0xff]
          %v644 = vld [vmem:[%s598 + $0x8] sm:$0xff]
          %v645 = vld [vmem:[%s598 + $0x10] sm:$0xff]
          %v646 = vld [vmem:[%s598 + $0x18] sm:$0xff]
          %v647 = vld [vmem:[%s601] sm:$0x1]
          %v649 = vperm.slane %v647, 0
          %651 = vmatpush.msra.mxu0 0.0
          %652 = vmatpush.msra.mxu0 0.0
          %653 = vmatpush.msra.mxu0 0.0
          %654 = vmatpush.msra.mxu0 0.0
          %655 = vmatpush.msra.mxu0 0.0
          %656 = vmatpush.msra.mxu0 0.0
          %657 = vmatpush.msra.mxu0 0.0
          %658 = vmatpush.msra.mxu0 0.0
          %659 = vmatpush.msra.mxu0 0.0
          %660 = vmatpush.msra.mxu0 0.0
          %661 = vmatpush.msra.mxu0 0.0
          %662 = vmatpush.msra.mxu0 0.0
          %663 = vmatpush.msra.mxu0 %v646
          %664 = vmatpush.msra.mxu0 %v645
          %665 = vmatpush.msra.mxu0 %v644
          %666 = vmatpush.msra.mxu0 %v643
          %667 = vmatmul.f32.gmra.mxu0 %v621
          %v668 = vpop.f32.mrf.mxu0
          %v669 = vadd.f32 %v649, %v668
          %670 = vdwg.mxu0
          %s671 = smul.u32 %s37, 8
          %s672 = scalar_lea.vmem [#allocation2], %s671
          %vm673 = vcmask 64512
          %674 = vst.msk [vmem:[%s672] sm:$0xff] %vm673, %v641
          %s675 = scalar_lea.vmem [#allocation3], %s671
          %676 = vst.msk [vmem:[%s675] sm:$0xff] %vm673, %v669
        $region68: #{tpu_custom_call.1} parent=63 // pred_fallthru
          _
        %v677 = vld [vmem:[%s570] sm:$0xff]
        %v678 = vld [vmem:[%s582] sm:$0xff]
        %v679 = vld [vmem:[%s582 + $0x8] sm:$0xff]
        %v680 = vld [vmem:[%s582 + $0x10] sm:$0xff]
        %v681 = vld [vmem:[%s582 + $0x18] sm:$0xff]
        %v682 = vld [vmem:[%s585] sm:$0x1]
        %v684 = vperm.slane %v682, 0
        %vm686 = vcmask 261120
        %v688 = vsel %vm686, %v677, 0
        %690 = vmatpush.msra.mxu0 0.0
        %691 = vmatpush.msra.mxu0 0.0
        %692 = vmatpush.msra.mxu0 0.0
        %693 = vmatpush.msra.mxu0 0.0
        %694 = vmatpush.msra.mxu0 0.0
        %695 = vmatpush.msra.mxu0 0.0
        %696 = vmatpush.msra.mxu0 0.0
        %697 = vmatpush.msra.mxu0 0.0
        %698 = vmatpush.msra.mxu0 0.0
        %699 = vmatpush.msra.mxu0 0.0
        %700 = vmatpush.msra.mxu0 0.0
        %701 = vmatpush.msra.mxu0 0.0
        %702 = vmatpush.msra.mxu0 %v681
        %703 = vmatpush.msra.mxu0 %v680
        %704 = vmatpush.msra.mxu0 %v679
        %705 = vmatpush.msra.mxu0 %v678
        %706 = vmatmul.f32.gmra.mxu0 %v688
        %v707 = vpop.f32.mrf.mxu0
        %v708 = vadd.f32 %v684, %v707
        %709 = vdwg.mxu0
        %v710 = vmul.f32 %v708, 0.35355338
        %s711 = smul.u32 %s37, 8
        %s712 = scalar_lea.vmem [#allocation2], %s711
        %v713 = vld [vmem:[%s712] sm:$0xff]
        %s714 = scalar_lea.vmem [#allocation3], %s711
        %v715 = vld [vmem:[%s714] sm:$0xff]
        %v716 = vld [vmem:[%s577] sm:$0x1]
        %v718 = vperm.slane %v716, 0
        %vm720 = vcmask 64512
        %v722 = vsel %vm720, %v710, 0
        %v725 = vsel %vm720, %v713, 0
        %727 = vmatpush.xpose.msra.mxu0 0.0
        %728 = vmatpush.xpose.msra.mxu0 0.0
        %729 = vmatpush.xpose.msra.mxu0 0.0
        %730 = vmatpush.xpose.msra.mxu0 0.0
        %731 = vmatpush.xpose.msra.mxu0 0.0
        %732 = vmatpush.xpose.msra.mxu0 0.0
        %733 = vmatpush.xpose.msra.mxu0 0.0
        %734 = vmatpush.xpose.msra.mxu0 0.0
        %735 = vmatpush.xpose.msra.mxu0 0.0
        %736 = vmatpush.xpose.msra.mxu0 0.0
        %737 = vmatpush.xpose.msra.mxu0 0.0
        %738 = vmatpush.xpose.msra.mxu0 0.0
        %739 = vmatpush.xpose.msra.mxu0 0.0
        %740 = vmatpush.xpose.msra.mxu0 0.0
        %741 = vmatpush.xpose.msra.mxu0 0.0
        %742 = vmatpush.xpose.msra.mxu0 %v725
        %743 = vmatmul.f32.gmra.mxu0 %v722
        %v744 = vpop.f32.mrf.mxu0
        %v745 = vadd.f32 %v718, %v744
        %746 = vdwg.mxu0
        %v747 = vsel %vm720, %v745, -inf
        %748 = vmax.xlane.f32.xlu0 %v747
        %v749 = vpop.xlane.xlu0 %748
        %v750 = vsub.f32 %v745, %v749
        %v751 = vmul.f32 %v750, 1.442695
        %v752 = vpow.pop %v751
        %v753 = vsel %vm720, %v752, 0.0
        %754 = vadd.xlane.f32.xlu0 %v753
        %v755 = vpop.xlane.xlu0 %754
        %v756 = vrcp.pop %v755
        %v757 = vmul.f32 %v755, %v756
        %v758 = vsub.f32 1.0, %v757
        %v759 = vmul.f32 %v756, %v758
        %v760 = vadd.f32 %v756, %v759
        %vm761 = vweird.f32 %v755
        %vm762 = vweird.f32 %v756
        %vm763 = vmor %vm761, %vm762
        %v764 = vsel %vm763, %v756, %v760
        %v765 = vand.u32 2147483647, %v755
        %vm766 = vcmp.eq.f32.partialorder %v765, 8.507059e+37
        %v767 = vand.u32 %v755, 2147483648
        %v768 = vor.u32 1.1754944e-38, %v767
        %v769 = vsel %vm766, %v768, %v764
        %v770 = vmul.f32 %v752, %v769
        %771 = vst.msk [vmem:[%s563] sm:$0xff] %vm720, %v770
        %v773 = vsel %vm720, %v770, 0
        %775 = vmatpush.msra.mxu0 0.0
        %776 = vmatpush.msra.mxu0 0.0
        %777 = vmatpush.msra.mxu0 0.0
        %778 = vmatpush.msra.mxu0 0.0
        %779 = vmatpush.msra.mxu0 0.0
        %780 = vmatpush.msra.mxu0 0.0
        %781 = vmatpush.msra.mxu0 0.0
        %782 = vmatpush.msra.mxu0 0.0
        %783 = vmatpush.msra.mxu0 0.0
        %784 = vmatpush.msra.mxu0 0.0
        %785 = vmatpush.msra.mxu0 0.0
        %786 = vmatpush.msra.mxu0 0.0
        %787 = vmatpush.msra.mxu0 0.0
        %788 = vmatpush.msra.mxu0 0.0
        %789 = vmatpush.msra.mxu0 0.0
        %790 = vmatpush.msra.mxu0 %v715
        %791 = vmatmul.f32.gmra.mxu0 %v773
        %v792 = vpop.f32.mrf.mxu0
        %v793 = vadd.f32 0.0, %v792
        %794 = vdwg.mxu0
        %v795 = vld [vmem:[%s605] sm:$0xff]
        %v797 = vsel %vm720, %v793, 0
        %799 = vmatpush.msra.mxu0 0.0
        %800 = vmatpush.msra.mxu0 0.0
        %801 = vmatpush.msra.mxu0 0.0
        %802 = vmatpush.msra.mxu0 0.0
        %803 = vmatpush.msra.mxu0 0.0
        %804 = vmatpush.msra.mxu0 0.0
        %805 = vmatpush.msra.mxu0 0.0
        %806 = vmatpush.msra.mxu0 0.0
        %807 = vmatpush.msra.mxu0 0.0
        %808 = vmatpush.msra.mxu0 0.0
        %809 = vmatpush.msra.mxu0 0.0
        %810 = vmatpush.msra.mxu0 0.0
        %811 = vmatpush.msra.mxu0 0.0
        %812 = vmatpush.msra.mxu0 0.0
        %813 = vmatpush.msra.mxu0 0.0
        %814 = vmatpush.msra.mxu0 %v795
        %815 = vmatmul.f32.gmra.mxu0 %v797
        %v816 = vpop.f32.mrf.mxu0
        %v817 = vadd.f32 0.0, %v816
        %818 = vdwg.mxu0
        %p819 = scmp.eq.s32.totalorder %s37, 0
        // Predicated region
        $region69: #{tpu_custom_call.1} parent=63 // pred_check
          %p820 = pneg %p819
        $region70: #{tpu_custom_call.1} parent=63 // pred_check_branch
          %822 = sbr.rel (%p820) target = $region72
        $region71: #{tpu_custom_call.1} parent=63 // pred_region
          %823 = vst.msk [vmem:[#allocation4] sm:$0xff] %vm686, 0.0
        $region72: #{tpu_custom_call.1} parent=63 // pred_fallthru
          _
        %v824 = vld [vmem:[#allocation4] sm:$0xff]
        %v825 = vadd.f32 %v824, %v817
        %826 = vst.msk [vmem:[#allocation4] sm:$0xff] %vm686, %v825
        %p827 = scmp.eq.s32.totalorder %s37, 3
        // Predicated region
        $region73: #{tpu_custom_call.1} parent=63 // pred_check
          %p828 = pneg %p827
        $region74: #{tpu_custom_call.1} parent=63 // pred_check_branch
          %830 = sbr.rel (%p828) target = $region76
        $region75: #{tpu_custom_call.1} parent=63 // pred_region
          %v831 = vld [vmem:[#allocation4] sm:$0xff]
          %v832 = vld [vmem:[%s10] sm:$0x1]
          %v834 = vperm.slane %v832, 0
          %v836 = vadd.f32 %v831, %v834
          %837 = vst.msk [vmem:[%s556] sm:$0xff] %vm686, %v836
        $region76: #{tpu_custom_call.1} parent=63 // pred_fallthru
          _
        %s838 = sand.u32 %s342, 1
        %s839 = scalar_lea.sflag [#allocation6], %s838
        %s840 = sand.u32 %s342, 1
        %s841 = smul.addr %s840, 8
        %s842 = scalar_lea.vmem [#allocation5], %s841
        %s843 = sand.u32 %s372, 1
        %s844 = scalar_lea.sflag [#allocation8], %s843
        %s845 = sand.u32 %s372, 1
        %s846 = smul.addr %s845, 8
        %s847 = scalar_lea.vmem [#allocation7], %s846
        // Predicated region
        $region77: #{tpu_custom_call.1} parent=63 // pred_check
          %p848 = pneg %p352
        $region78: #{tpu_custom_call.1} parent=63 // pred_check_branch
          %850 = sbr.rel (%p848) target = $region80
        $region79: #{tpu_custom_call.1} parent=63 // pred_region
          %852 = vsyncadd %s839, 0
          %s853 = sadd.s32 %s36, %s35
          %s854 = smul.addr %s853, 8
          %s855 = scalar_lea.hbm %s11, %s854
          %s857 = sshll.u32 %s842, 4
          %s858 = int_to_ptr.vmem [resolvable:$true] %s857
          %s859 = sshll.u32 %s855, 4
          %s860 = int_to_ptr.hbm [resolvable:$true] %s859
          %862 = dma.vmem_to_hbm [thread:$0]  %s858, 128, %s860, %s839
        $region80: #{tpu_custom_call.1} parent=63 // pred_fallthru
          _
        // Predicated region
        $region81: #{tpu_custom_call.1} parent=63 // pred_check
          %p863 = pneg %p382
        $region82: #{tpu_custom_call.1} parent=63 // pred_check_branch
          %865 = sbr.rel (%p863) target = $region84
        $region83: #{tpu_custom_call.1} parent=63 // pred_region
          %867 = vsyncadd %s844, 0
          %s868 = sadd.s32 %s36, %s37
          %s869 = smul.addr %s35, 4
          %s870 = sadd.s32 %s868, %s869
          %s871 = smul.addr %s870, 8
          %s872 = scalar_lea.hbm %s12, %s871
          %s874 = sshll.u32 %s847, 4
          %s875 = int_to_ptr.vmem [resolvable:$true] %s874
          %s876 = sshll.u32 %s872, 4
          %s877 = int_to_ptr.hbm [resolvable:$true] %s876
          %879 = dma.vmem_to_hbm [thread:$0]  %s875, 128, %s877, %s844
        $region84: #{tpu_custom_call.1} parent=63 // pred_fallthru
          _
      $region64: #{tpu_custom_call.1} parent=5 // pred_fallthru
        _
      %p880 = scmp.le.s32.totalorder 2, %s25
      // Predicated region
      $region85: #{tpu_custom_call.1} parent=5 // pred_check
        %p881 = pneg %p880
      $region86: #{tpu_custom_call.1} parent=5 // pred_check_branch
        %883 = sbr.rel (%p881) target = $region88
      $region87: #{tpu_custom_call.1} parent=5 // pred_region
        %s884 = ssub.s32 %s25, 2
        // Predicated region
        $region89: #{tpu_custom_call.1} parent=87 // pred_check
          %p885 = pneg %p358
        $region90: #{tpu_custom_call.1} parent=87 // pred_check_branch
          %887 = sbr.rel (%p885) target = $region92
        $region91: #{tpu_custom_call.1} parent=87 // pred_region
          %s888 = sand.u32 %s343, 1
          %s889 = scalar_lea.sflag [#allocation6], %s888
          %s890 = sand.u32 %s343, 1
          %s891 = smul.addr %s890, 8
          %s892 = scalar_lea.vmem [#allocation5], %s891
          %894 = dma.done %s889, 128
        $region92: #{tpu_custom_call.1} parent=87 // pred_fallthru
          _
        // Predicated region
        $region93: #{tpu_custom_call.1} parent=87 // pred_check
          %p895 = pneg %p388
        $region94: #{tpu_custom_call.1} parent=87 // pred_check_branch
          %897 = sbr.rel (%p895) target = $region96
        $region95: #{tpu_custom_call.1} parent=87 // pred_region
          %s898 = sand.u32 %s373, 1
          %s899 = scalar_lea.sflag [#allocation8], %s898
          %s900 = sand.u32 %s373, 1
          %s901 = smul.addr %s900, 8
          %s902 = scalar_lea.vmem [#allocation7], %s901
          %904 = dma.done %s899, 128
        $region96: #{tpu_custom_call.1} parent=87 // pred_fallthru
          _
      $region88: #{tpu_custom_call.1} parent=5 // pred_fallthru
        _
    $region6: #{tpu_custom_call.1} parent=1 // loop_footer
      %s29 = sadd.s32 1, %s25
    $region7: #{tpu_custom_call.1} parent=1 // loop_footer_branch
      %24 = sbr.rel target = $region3
    $region8: #{tpu_custom_call.1} parent=1 // loop_exit
      _
    %905 = vsyncpa [#allocation6], 1
    %s906 = scalar_lea.sflag [#allocation6], 1
    %907 = vsyncpa %s906, 1
    %908 = vsyncpa [#allocation8], 1
    %s909 = scalar_lea.sflag [#allocation8], 1
    %910 = vsyncpa %s909, 1

</llo_original>
